<compile_context>
chip_gen: v6e
topology: v6e:2x2x1
jax: 0.10.0
libtpu: 0.0.40
codegen_flags: <defaults>
</compile_context>

<pallas_src>
import functools

import jax
import jax.numpy as jnp
from jax.experimental import pallas as pl
from jax.experimental.pallas import tpu as pltpu

_LANE = 128


def _round_up(n, m):
    return ((n + m - 1) // m) * m


def _binary_classifier_kernel(xT_ref, w_ref, b_ref, o_ref):
    # xT_ref: (F, TB)    f32 VMEM -- features on sublanes, samples on lanes
    # w_ref : (F, 1)     f32 VMEM -- weight column, same block every grid step
    # b_ref : (1, 1)     f32 SMEM -- bias scalar
    # o_ref : (1, 1, TB) f32 VMEM -- lane-dense output tile
    xw = xT_ref[...] * w_ref[...]                          # VPU: (F, TB)
    z = jnp.sum(xw, axis=0, keepdims=True) + b_ref[0, 0]   # XLU sublane reduce: (1, TB)
    # Sigmoid: exp + divide both run on the EUP; exact divide keeps 1e-5 numerics.
    o_ref[0] = 1.0 / (1.0 + jnp.exp(-z))


@functools.partial(jax.jit, static_argnames=("tb",))
def binary_classifier(x, weight, bias, *, tb=8192):
    """sigmoid(x @ weight.T + bias).  x: [B, F], weight: [1, F], bias: [1] -> [B, 1].

    tb: batch tile size (multiple of 128)."""
    B, F = x.shape
    TB = min(tb, _round_up(B, _LANE))       # lane-dense tile, >= one full vreg row
    B_pad = _round_up(B, TB)
    G = B_pad // TB

    # Layout plumbing in the wrapper: pad batch, put samples on the lane axis.
    xT = jnp.pad(x.astype(jnp.float32), ((0, B_pad - B), (0, 0))).T   # (F, B_pad)
    w_col = weight.astype(jnp.float32).reshape(F, 1)                  # (F, 1)
    b_sc = bias.astype(jnp.float32).reshape(1, 1)                     # (1, 1)

    out = pl.pallas_call(
        _binary_classifier_kernel,
        out_shape=jax.ShapeDtypeStruct((G, 1, TB), jnp.float32),
        grid=(G,),
        in_specs=[
            pl.BlockSpec((F, TB), lambda i: (0, i)),                  # x tile per step
            pl.BlockSpec((F, 1), lambda i: (0, 0)),                   # resident weight
            pl.BlockSpec(memory_space=pltpu.MemorySpace.SMEM),        # bias scalar
        ],
        out_specs=pl.BlockSpec((1, 1, TB), lambda i: (i, 0, 0)),      # lane-dense store
        compiler_params=pltpu.CompilerParams(
            dimension_semantics=("parallel",),                        # megacore on v7x
        ),
    )(xT, w_col, b_sc)

    return out.reshape(B_pad, 1)[:B]


def reference(x, weight, bias):
    return jax.nn.sigmoid(x @ weight.T + bias[None, :])


if __name__ == "__main__":
    key = jax.random.PRNGKey(0)
    kx, kw, kb = jax.random.split(key, 3)

    # batch=300 (not a multiple of 128) exercises padding + a multi-step parallel grid
    B, F = 300, 8
    x = jax.random.normal(kx, (B, F), dtype=jnp.float32)

    # Deterministic parameter init mimicking nn.Linear's U(-1/sqrt(F), 1/sqrt(F))
    bound = 1.0 / jnp.sqrt(jnp.float32(F))
    weight = jax.random.uniform(kw, (1, F), jnp.float32, -bound, bound)
    bias = jax.random.uniform(kb, (1,), jnp.float32, -bound, bound)

    # tb=128 forces a 3-step grid at this small batch to exercise the pipeline.
    out = binary_classifier(x, weight, bias, tb=128)
    out = jax.block_until_ready(out)

    ref = reference(x, weight, bias)
    assert out.shape == (B, 1), out.shape
    assert jnp.allclose(out, ref, atol=1e-5, rtol=1e-5), float(jnp.max(jnp.abs(out - ref)))

    print("KERNEL_OK")
</pallas_src>

<mosaic_0001>
module attributes {stable_mosaic.version = 11 : i64} {
  func.func @_binary_classifier_kernel(%arg0: i32, %arg1: memref<8x128xf32, #tpu.memory_space<vmem>>, %arg2: memref<8x1xf32, #tpu.memory_space<vmem>>, %arg3: memref<1x1xf32, #tpu.memory_space<smem>>, %arg4: memref<1x1x128xf32, #tpu.memory_space<vmem>>) attributes {dimension_semantics = [#tpu.dimension_semantics<parallel>], iteration_bounds = array<i64: 3>, scalar_prefetch = 0 : i64, scratch_operands = 0 : i64, tpu.core_type = #tpu.core_type<tc>, window_params = [{transform_indices = @transform_0, window_bounds = array<i64: 8, 128>}, {pipeline_mode = #tpu.pipeline_mode<synchronous>, transform_indices = @transform_1, window_bounds = array<i64: 8, 1>}, {transform_indices = @transform_2, window_bounds = array<i64: 1, 1>}, {transform_indices = @transform_3, window_bounds = array<i64: 1, 1, 128>}]} {
    %c0 = arith.constant 0 : index
    %c0_0 = arith.constant 0 : index
    %0 = vector.load %arg1[%c0, %c0_0] : memref<8x128xf32, #tpu.memory_space<vmem>>, vector<8x128xf32>
    %c0_1 = arith.constant 0 : index
    %c0_2 = arith.constant 0 : index
    %1 = vector.load %arg2[%c0_1, %c0_2] : memref<8x1xf32, #tpu.memory_space<vmem>>, vector<8x1xf32>
    %2 = vector.broadcast %1 : vector<8x1xf32> to vector<8x128xf32>
    %3 = arith.mulf %0, %2 : vector<8x128xf32>
    %cst = arith.constant dense<0.000000e+00> : vector<128xf32>
    %4 = vector.multi_reduction <add>, %3, %cst [0] : vector<8x128xf32> to vector<128xf32>
    %5 = vector.shape_cast %4 : vector<128xf32> to vector<1x128xf32>
    %c0_3 = arith.constant 0 : index
    %c0_4 = arith.constant 0 : index
    %6 = memref.load %arg3[%c0_3, %c0_4] : memref<1x1xf32, #tpu.memory_space<smem>>
    %7 = vector.broadcast %6 : f32 to vector<1x128xf32>
    %8 = arith.addf %5, %7 : vector<1x128xf32>
    %cst_5 = arith.constant 0.000000e+00 : f32
    %9 = vector.broadcast %cst_5 : f32 to vector<1x128xf32>
    %10 = arith.subf %9, %8 : vector<1x128xf32>
    %11 = math.exp %10 : vector<1x128xf32>
    %cst_6 = arith.constant 1.000000e+00 : f32
    %12 = vector.broadcast %cst_6 : f32 to vector<1x128xf32>
    %13 = arith.addf %12, %11 : vector<1x128xf32>
    %cst_7 = arith.constant 1.000000e+00 : f32
    %14 = vector.broadcast %cst_7 : f32 to vector<1x128xf32>
    %15 = arith.divf %14, %13 : vector<1x128xf32>
    %c0_8 = arith.constant 0 : index
    %c0_9 = arith.constant 0 : index
    %c0_10 = arith.constant 0 : index
    %16 = vector.load %arg4[%c0_8, %c0_9, %c0_10] : memref<1x1x128xf32, #tpu.memory_space<vmem>>, vector<1x1x128xf32>
    %17 = vector.shape_cast %16 : vector<1x1x128xf32> to vector<1x128xf32>
    %18 = vector.shape_cast %15 : vector<1x128xf32> to vector<1x1x128xf32>
    tpu.vector_store %arg4[%c0_8, %c0_9, %c0_10], %18 {strides = array<i32>} : memref<1x1x128xf32, #tpu.memory_space<vmem>>, vector<1x1x128xf32>,
    return
  }
  func.func @transform_0(%arg0: i32) -> (i32, i32) {
    %c0_i32 = arith.constant 0 : i32
    %c0_i32_0 = arith.constant 0 : i32
    return %c0_i32, %arg0 : i32, i32
  }
  func.func @transform_1(%arg0: i32) -> (i32, i32) {
    %c0_i32 = arith.constant 0 : i32
    %c0_i32_0 = arith.constant 0 : i32
    %c0_i32_1 = arith.constant 0 : i32
    return %c0_i32, %c0_i32_0 : i32, i32
  }
  func.func @transform_2(%arg0: i32) -> (i32, i32) {
    %c0_i32 = arith.constant 0 : i32
    %c0_i32_0 = arith.constant 0 : i32
    %c0_i32_1 = arith.constant 0 : i32
    return %c0_i32, %c0_i32_0 : i32, i32
  }
  func.func @transform_3(%arg0: i32) -> (i32, i32, i32) {
    %c0_i32 = arith.constant 0 : i32
    %c0_i32_0 = arith.constant 0 : i32
    %c0_i32_1 = arith.constant 0 : i32
    return %arg0, %c0_i32, %c0_i32_0 : i32, i32, i32
  }
}

</mosaic_0001>

<llo_original>
// kernel: binary_classifier.1
$region0: #{binary_classifier.1}
  #allocation0 [shape = 'u32[]', space=smem, size = 0x4, offset = 0x4, fixed_abs, tag = 'smem constant byte address 0x4 - core index']
  #allocation1 [shape = 'u32[144,128]{1,0:T(1,128)}', space=vmem, size = 0x12000, scoped, tag = 'internal scratch']
  #allocation2 [shape = 'f32[1,1]{1,0:T(1,128)S(6)}', space=smem, size = 0x200, scoped, tag = 'scoped memory for binary_classifier.1']
  %s0 = inlined_call_operand.vmem [shape: f32[8,384], index: 0, kind: input, shape index: {}]
  %s1 = inlined_call_operand.vmem [shape: f32[8,1], index: 1, kind: input, shape index: {}]
  %s2 = inlined_call_operand.<no memory space> [shape: f32[1,1], index: 2, kind: input, shape index: {}]
  %s3 = inlined_call_operand.hbm [shape: f32[3,1,128], index: 3, kind: output, shape index: {}]
  %s4 = sld [smem:[#allocation0]]
  $region45: #{binary_classifier.1} parent=0
    _
  %s6 = ssub.s32 1, %s4
  %s7 = scalar_select 0, %s6, %s4
  %8 = sst [smem:[#allocation2]] %s2
  $region1: #{binary_classifier.1} parent=0
    #allocation3 [shape = 'u8[1024]{0}', space=vmem, size = 0x400, scoped, tag = 'output window, operand 0']
    #allocation4 [shape = 's32[2]{0}', space=sflag, size = 0x8, scoped, tag = 'scoped memory for binary_classifier.1']
    %9 = vsyncpa [#allocation4], 0
    %s10 = scalar_lea.sflag [#allocation4], 1
    %11 = vsyncpa %s10, 0
    loop: start=0, step=1, limit=5
    $region2: #{binary_classifier.1} parent=1 // loop_pre_header
      _
    $region3: #{binary_classifier.1} parent=1 // loop_header
      %s13 = sphi 0, %s17
      %p14 = scmp.ge.s32.totalorder %s13, 5
      %s23 = sphi 0, %s25
      %s26 = sphi 0, %s23
      %s27 = sphi 0, %s26
      %s43 = sphi 0, %s27
      %s47 = sphi 0, %s47
      %s49 = sphi 0, %s47
      %s50 = sphi 0, %s49
      %s64 = sphi 0, %s50
      %s68 = sphi 0, %s68
      %s70 = sphi 0, %s68
      %s71 = sphi 0, %s70
      %s85 = sphi 0, %s71
      %s91 = sphi 0, %s93
      %s94 = sphi 0, %s91
      %s95 = sphi 0, %s94
      %s111 = sphi 0, %s95
    $region4: #{binary_classifier.1} parent=1 // loop_header_branch
      %16 = sbr.rel (%p14) target = $region8
    $region5: #{binary_classifier.1} parent=1 // loop_body
      %s18 = ssub.s32 %s13, 1
      %s19 = ssub.s32 %s13, 2
      %s20 = sadd.s32 %s13, 1
      %s21 = ssub.s32 %s13, %s20
      %p22 = scmp.eq.s32.totalorder %s21, 0
      %s24 = sadd.s32 %s23, 1
      %s25 = scalar_select %p22, %s23, %s24
      %p28 = pneg %p22
      %p29 = scmp.eq.s32.totalorder %s13, 2
      %p30 = por %p28, %p29
      %p31 = scmp.ne.s32.totalorder %s23, %s26
      %p32 = scmp.eq.s32.totalorder %s13, 0
      %p33 = por %p31, %p32
      %p34 = scmp.ne.s32.totalorder %s23, %s26
      %p35 = scmp.eq.s32.totalorder %s18, 2
      %p36 = por %p34, %p35
      %p37 = scmp.ne.s32.totalorder %s26, %s27
      %p38 = scmp.eq.s32.totalorder %s18, 0
      %p39 = por %p37, %p38
      %p40 = scmp.ne.s32.totalorder %s26, %s27
      %p41 = scmp.eq.s32.totalorder %s19, 2
      %p42 = por %p40, %p41
      %p44 = scmp.ne.s32.totalorder %s27, %s43
      %p45 = scmp.eq.s32.totalorder %s19, 0
      %p46 = por %p44, %p45
      %s48 = sadd.s32 %s47, 1
      %p51 = scmp.eq.s32.totalorder %s13, 2
      %p52 = scmp.ne.s32.totalorder %s47, %s49
      %p53 = scmp.eq.s32.totalorder %s13, 0
      %p54 = por %p52, %p53
      %p55 = scmp.ne.s32.totalorder %s47, %s49
      %p56 = scmp.eq.s32.totalorder %s18, 2
      %p57 = por %p55, %p56
      %p58 = scmp.ne.s32.totalorder %s49, %s50
      %p59 = scmp.eq.s32.totalorder %s18, 0
      %p60 = por %p58, %p59
      %p61 = scmp.ne.s32.totalorder %s49, %s50
      %p62 = scmp.eq.s32.totalorder %s19, 2
      %p63 = por %p61, %p62
      %p65 = scmp.ne.s32.totalorder %s50, %s64
      %p66 = scmp.eq.s32.totalorder %s19, 0
      %p67 = por %p65, %p66
      %s69 = sadd.s32 %s68, 1
      %p72 = scmp.eq.s32.totalorder %s13, 2
      %p73 = scmp.ne.s32.totalorder %s68, %s70
      %p74 = scmp.eq.s32.totalorder %s13, 0
      %p75 = por %p73, %p74
      %p76 = scmp.ne.s32.totalorder %s68, %s70
      %p77 = scmp.eq.s32.totalorder %s18, 2
      %p78 = por %p76, %p77
      %p79 = scmp.ne.s32.totalorder %s70, %s71
      %p80 = scmp.eq.s32.totalorder %s18, 0
      %p81 = por %p79, %p80
      %p82 = scmp.ne.s32.totalorder %s70, %s71
      %p83 = scmp.eq.s32.totalorder %s19, 2
      %p84 = por %p82, %p83
      %p86 = scmp.ne.s32.totalorder %s71, %s85
      %p87 = scmp.eq.s32.totalorder %s19, 0
      %p88 = por %p86, %p87
      %s89 = ssub.s32 %s13, %s20
      %p90 = scmp.eq.s32.totalorder %s89, 0
      %s92 = sadd.s32 %s91, 1
      %s93 = scalar_select %p90, %s91, %s92
      %p96 = pneg %p90
      %p97 = scmp.eq.s32.totalorder %s13, 2
      %p98 = por %p96, %p97
      %p99 = scmp.ne.s32.totalorder %s91, %s94
      %p100 = scmp.eq.s32.totalorder %s13, 0
      %p101 = por %p99, %p100
      %p102 = scmp.ne.s32.totalorder %s91, %s94
      %p103 = scmp.eq.s32.totalorder %s18, 2
      %p104 = por %p102, %p103
      %p105 = scmp.ne.s32.totalorder %s94, %s95
      %p106 = scmp.eq.s32.totalorder %s18, 0
      %p107 = por %p105, %p106
      %p108 = scmp.ne.s32.totalorder %s94, %s95
      %p109 = scmp.eq.s32.totalorder %s19, 2
      %p110 = por %p108, %p109
      %p112 = scmp.ne.s32.totalorder %s95, %s111
      %p113 = scmp.eq.s32.totalorder %s19, 0
      %p114 = por %p112, %p113
      %p115 = scmp.le.s32.totalorder 1, %s13
      %p116 = scmp.lt.s32.totalorder %s13, 4
      %p117 = pnand %p115, %p116
      %p118 = pneg %p117
      // Predicated region
      $region9: #{binary_classifier.1} parent=5 // pred_check
        _
      $region10: #{binary_classifier.1} parent=5 // pred_check_branch
        %120 = sbr.rel (%p117) target = $region12
      $region11: #{binary_classifier.1} parent=5 // pred_region
        %s121 = ssub.s32 %s13, 1
        // Predicated region
        $region13: #{binary_classifier.1} parent=11 // pred_check
          %p122 = pneg %p60
        $region14: #{binary_classifier.1} parent=11 // pred_check_branch
          %124 = sbr.rel (%p122) target = $region16
        $region15: #{binary_classifier.1} parent=11 // pred_region
          _
        $region16: #{binary_classifier.1} parent=11 // pred_fallthru
          _
        // Predicated region
        $region17: #{binary_classifier.1} parent=11 // pred_check
          %p125 = pneg %p81
        $region18: #{binary_classifier.1} parent=11 // pred_check_branch
          %127 = sbr.rel (%p125) target = $region20
        $region19: #{binary_classifier.1} parent=11 // pred_region
          _
        $region20: #{binary_classifier.1} parent=11 // pred_fallthru
          _
      $region12: #{binary_classifier.1} parent=5 // pred_fallthru
        _
      %p128 = scmp.lt.s32.totalorder %s13, 3
      // Predicated region
      $region21: #{binary_classifier.1} parent=5 // pred_check
        %p129 = pneg %p128
      $region22: #{binary_classifier.1} parent=5 // pred_check_branch
        %131 = sbr.rel (%p129) target = $region24
      $region23: #{binary_classifier.1} parent=5 // pred_region
        // Predicated region
        $region25: #{binary_classifier.1} parent=23 // pred_check
          %p132 = pneg %p33
        $region26: #{binary_classifier.1} parent=23 // pred_check_branch
          %134 = sbr.rel (%p132) target = $region28
        $region27: #{binary_classifier.1} parent=23 // pred_region
          %p135 = scmp.lt.s32.totalorder %s13, 2
          %s136 = scalar_select %p135, %s13, 2
          %s137 = smul.addr %s136, 8
          %s138 = scalar_lea.vmem %s0, %s137
        $region28: #{binary_classifier.1} parent=23 // pred_fallthru
          _
      $region24: #{binary_classifier.1} parent=5 // pred_fallthru
        _
      %p139 = scmp.le.s32.totalorder 1, %s13
      %p140 = scmp.lt.s32.totalorder %s13, 4
      %p141 = pnand %p139, %p140
      %p142 = pneg %p141
      // Predicated region
      $region29: #{binary_classifier.1} parent=5 // pred_check
        _
      $region30: #{binary_classifier.1} parent=5 // pred_check_branch
        %144 = sbr.rel (%p141) target = $region32
      $region31: #{binary_classifier.1} parent=5 // pred_region
        %s145 = ssub.s32 %s13, 1
        %p146 = scmp.lt.s32.totalorder %s18, 2
        %s147 = scalar_select %p146, %s18, 2
        %s148 = smul.addr %s147, 8
        %s149 = scalar_lea.vmem %s0, %s148
        %p150 = pneg %p39
        %p151 = pneg %p36
        %p152 = pneg %p60
        %p153 = pneg %p57
        %p154 = pneg %p81
        %p155 = pneg %p78
        %p156 = pneg %p107
        %p157 = pneg %p104
        %s158 = sand.u32 %s94, 1
        %s159 = scalar_lea.sflag [#allocation4], %s158
        %s160 = sand.u32 %s94, 1
        %s161 = scalar_lea.vmem [#allocation3], %s160
        %p162 = scmp.lt.s32.totalorder %s18, 2
        %s163 = scalar_select %p162, %s18, 2
        %s164 = smul.addr %s163, 8
        %s165 = scalar_lea.vmem %s0, %s164
        %v166 = vld [vmem:[%s165] sm:$0xff]
        %v167 = vld [vmem:[%s1] sm:$0xff]
        %169 = vset.pattern.permute.xlu0 0
        %170 = vperm.xlu0 %169, %v167
        %v171 = vpop.permute.xlu0 %170
        %v173 = vmul.f32 %v166, %v171
        %v174 = vrot.slane %v173, 4
        %v175 = vadd.f32 %v173, %v174
        %v176 = vrot.slane %v175, 2
        %v177 = vadd.f32 %v175, %v176
        %v178 = vrot.slane %v177, 1
        %v179 = vadd.f32 %v177, %v178
        %s180 = sld [smem:[#allocation2]]
        %v181 = vstv %s180
        %v182 = vadd.f32 %v179, %v181
        %v183 = vsub.f32 0.0, %v182
        %v184 = vmul.f32 %v183, 1.442695
        %v185 = vpow.pop %v184
        %v186 = vadd.f32 %v185, 1.0
        %v187 = vrcp.pop %v186
        %v188 = vmul.f32 1.0, %v187
        %189 = vst [vmem:[%s161] sm:$0x1] %v188
        %s190 = sand.u32 %s94, 1
        %s191 = scalar_lea.sflag [#allocation4], %s190
        %s192 = sand.u32 %s94, 1
        %s193 = scalar_lea.vmem [#allocation3], %s192
        // Predicated region
        $region33: #{binary_classifier.1} parent=31 // pred_check
          %p194 = pneg %p104
        $region34: #{binary_classifier.1} parent=31 // pred_check_branch
          %196 = sbr.rel (%p194) target = $region36
        $region35: #{binary_classifier.1} parent=31 // pred_region
          %s198 = ssub.s32 16, 16
          %199 = vsyncadd %s191, %s198
          %s200 = smul.addr %s18, 16
          %s201 = scalar_lea.hbm %s3, %s200
          %s203 = sshll.u32 %s193, 4
          %s204 = int_to_ptr.vmem [resolvable:$true] %s203
          %206 = dma.vmem_to_hbm [thread:$0]  %s204, 16, %s201, %s191
        $region36: #{binary_classifier.1} parent=31 // pred_fallthru
          _
      $region32: #{binary_classifier.1} parent=5 // pred_fallthru
        _
      %p207 = scmp.le.s32.totalorder 2, %s13
      // Predicated region
      $region37: #{binary_classifier.1} parent=5 // pred_check
        %p208 = pneg %p207
      $region38: #{binary_classifier.1} parent=5 // pred_check_branch
        %210 = sbr.rel (%p208) target = $region40
      $region39: #{binary_classifier.1} parent=5 // pred_region
        %s211 = ssub.s32 %s13, 2
        // Predicated region
        $region41: #{binary_classifier.1} parent=39 // pred_check
          %p212 = pneg %p110
        $region42: #{binary_classifier.1} parent=39 // pred_check_branch
          %214 = sbr.rel (%p212) target = $region44
        $region43: #{binary_classifier.1} parent=39 // pred_region
          %s215 = sand.u32 %s95, 1
          %s216 = scalar_lea.sflag [#allocation4], %s215
          %s217 = sand.u32 %s95, 1
          %s218 = scalar_lea.vmem [#allocation3], %s217
          %219 = dma.done %s216, 16
        $region44: #{binary_classifier.1} parent=39 // pred_fallthru
          _
      $region40: #{binary_classifier.1} parent=5 // pred_fallthru
        _
    $region6: #{binary_classifier.1} parent=1 // loop_footer
      %s17 = sadd.s32 1, %s13
    $region7: #{binary_classifier.1} parent=1 // loop_footer_branch
      %12 = sbr.rel target = $region3
    $region8: #{binary_classifier.1} parent=1 // loop_exit
      _
    %220 = vsyncpa [#allocation4], 1
    %s221 = scalar_lea.sflag [#allocation4], 1
    %222 = vsyncpa %s221, 1

</llo_original>
